<compile_context>
chip_gen: v7x
topology: tpu7x:2x2x1
jax: 0.10.0
libtpu: 0.0.40
codegen_flags: <defaults>
</compile_context>

<pallas_src>
import jax
import jax.numpy as jnp
from jax import lax
from jax.experimental import pallas as pl
from jax.experimental.pallas import tpu as pltpu


def _pick_time_tile(T, Cin, Cout, requested, vmem_budget_bytes=24 * 1024 * 1024):
    """Full-extent T when small (always layout-legal); otherwise the largest
    multiple of 128 <= requested whose double-buffered working set fits the
    VMEM budget (conservative for v7x's 64 MiB per-TensorCore VMEM)."""
    if T <= max(requested, 128):
        return T
    tt = max((min(requested, T) // 128) * 128, 128)
    # per time-step bytes: 2x-buffered f32 x block + 2x-buffered bf16 out block
    # + f32 y/accumulator temps.
    bytes_per_t = 2 * (Cin * 4) + 2 * (Cout * 2) + 2 * (Cout * 4)
    while tt > 128 and tt * bytes_per_t > vmem_budget_bytes:
        tt -= 128
    return tt


def _make_stats_kernel(T, Tt, need_mask):
    # Pass 1: conv1x1 + ReLU + per-tile partial channel statistics.
    def kernel(x_ref, w_ref, ps_ref):
        # x_ref: (Cin, Tt) input dtype; w_ref: (Cout, Cin) bf16; ps_ref: (Cout, 2) f32
        x = x_ref[...].astype(w_ref.dtype)           # bf16 cast fused in-kernel
        y = jnp.dot(w_ref[...], x, preferred_element_type=jnp.float32)
        y = jnp.maximum(y, 0.0)                      # ReLU (f32)
        if need_mask:                                # ragged last time tile
            valid = T - pl.program_id(1) * Tt
            lane = lax.broadcasted_iota(jnp.int32, y.shape, 1)
            y = jnp.where(lane < valid, y, 0.0)
        # Cross-lane (time) reductions run on the XLU slot, hidden under the MXU.
        # TODO(synk): E[x^2]-E[x]^2 in f32; a Welford-style combine of the tile
        # partials would be safer for extremely large B*T.
        ps_ref[:, 0:1] = jnp.sum(y, axis=1, keepdims=True)
        ps_ref[:, 1:2] = jnp.sum(y * y, axis=1, keepdims=True)

    return kernel


def _bn_kernel(x_ref, w_ref, scale_ref, shift_ref, out_ref):
    # Pass 2: recompute conv1x1 + ReLU, apply BN affine, store (bf16 by default).
    x = x_ref[...].astype(w_ref.dtype)
    y = jnp.dot(w_ref[...], x, preferred_element_type=jnp.float32)
    y = jnp.maximum(y, 0.0)
    out_ref[...] = (y * scale_ref[...] + shift_ref[...]).astype(out_ref.dtype)


def conv1d_relu_bn(x_bct, weight, gamma, beta, *, eps=1e-5, time_tile=1024,
                   matmul_dtype=jnp.bfloat16, out_dtype=jnp.bfloat16):
    """x_bct: (B, Cin, T); weight: (Cout, Cin, 1) (Conv1d, bias=False);
    gamma/beta: (Cout,) BatchNorm1d affine params.
    Returns (B, Cout, T) out_dtype, matching bn(relu(conv(x))) with BatchNorm1d
    in training mode (batch statistics)."""
    B, Cin, T = x_bct.shape
    Cout, Cin_w, K = weight.shape
    assert Cin_w == Cin
    assert K == 1, "only the module defaults (kernel_size=1, stride=1) are supported"
    # TODO(synk): general kernel_size / stride / padding / dilation would need
    # halo'd time blocks; only the default 1x1 pointwise conv is implemented.

    Tt = _pick_time_tile(T, Cin, Cout, time_tile)
    n_t = (T + Tt - 1) // Tt

    w2 = weight[:, :, 0].astype(matmul_dtype)        # (Cout, Cin), tiny one-time cast

    x_spec = pl.BlockSpec((None, Cin, Tt), lambda b, t: (b, 0, t))
    w_spec = pl.BlockSpec((Cout, Cin), lambda b, t: (0, 0))

    cparams = pltpu.CompilerParams(
        dimension_semantics=("parallel", "parallel"),
        vmem_limit_bytes=48 * 1024 * 1024)

    # -------- pass 1: conv1x1 + ReLU + per-tile partial channel stats --------
    stats = pl.pallas_call(
        _make_stats_kernel(T, Tt, T % Tt != 0),
        out_shape=jax.ShapeDtypeStruct((B, n_t, Cout, 2), jnp.float32),
        grid_spec=pltpu.PrefetchScalarGridSpec(
            num_scalar_prefetch=0,
            grid=(B, n_t),
            in_specs=[x_spec, w_spec],
            out_specs=pl.BlockSpec((None, None, Cout, 2),
                                   lambda b, t: (b, t, 0, 0)),
        ),
        compiler_params=cparams,
    )(x_bct, w2)

    # -------- tiny (Cout,)-sized reduction + BN scale/shift in plain JAX -----
    s = jnp.sum(stats[..., 0], axis=(0, 1))          # (Cout,)
    sq = jnp.sum(stats[..., 1], axis=(0, 1))         # (Cout,)
    count = float(B * T)                              # true (unmasked) count
    mean = s / count
    var = jnp.maximum(sq / count - mean * mean, 0.0)  # biased var (train mode)
    inv = gamma.astype(jnp.float32) / jnp.sqrt(var + eps)
    scale = inv.reshape(Cout, 1)                      # broadcast over lanes (T)
    shift = (beta.astype(jnp.float32) - mean * inv).reshape(Cout, 1)
    # TODO(synk): BatchNorm1d's running_mean/running_var buffer updates are
    # stateful training bookkeeping and are not materialized here.

    # -------- pass 2: recompute conv1x1 + ReLU, apply BN affine --------------
    out = pl.pallas_call(
        _bn_kernel,
        out_shape=jax.ShapeDtypeStruct((B, Cout, T), out_dtype),
        grid_spec=pltpu.PrefetchScalarGridSpec(
            num_scalar_prefetch=0,
            grid=(B, n_t),
            in_specs=[x_spec, w_spec,
                      pl.BlockSpec((Cout, 1), lambda b, t: (0, 0)),
                      pl.BlockSpec((Cout, 1), lambda b, t: (0, 0))],
            out_specs=pl.BlockSpec((None, Cout, Tt), lambda b, t: (b, 0, t)),
        ),
        compiler_params=cparams,
    )(x_bct, w2, scale, shift)

    return out                                        # native (B, Cout, T)


def _reference(x_bct, weight, gamma, beta, eps=1e-5, matmul_dtype=jnp.bfloat16):
    # Pure-JAX reference with the same bf16 input quantization (isolates the
    # kernel's layout / BN logic from the intentional bf16 cast).
    xq = x_bct.astype(matmul_dtype).astype(jnp.float32)
    wq = weight[:, :, 0].astype(matmul_dtype).astype(jnp.float32)
    y = jnp.maximum(jnp.einsum('oc,bct->bot', wq, xq), 0.0)      # (B, Cout, T)
    mean = jnp.mean(y, axis=(0, 2))
    var = jnp.maximum(jnp.mean(y * y, axis=(0, 2)) - mean * mean, 0.0)
    return (gamma[None, :, None] * (y - mean[None, :, None])
            / jnp.sqrt(var[None, :, None] + eps) + beta[None, :, None])


if __name__ == "__main__":
    B, Cin, Cout, T = 2, 4, 8, 16   # batch, in_channels, out_channels, time

    key = jax.random.PRNGKey(0)
    kx, kw, kg, kb = jax.random.split(key, 4)
    x = jax.random.normal(kx, (B, Cin, T), dtype=jnp.float32)
    weight = 0.1 * jax.random.normal(kw, (Cout, Cin, 1), dtype=jnp.float32)
    gamma = 1.0 + 0.1 * jax.random.normal(kg, (Cout,), dtype=jnp.float32)
    beta = 0.1 * jax.random.normal(kb, (Cout,), dtype=jnp.float32)

    ref = _reference(x, weight, gamma, beta)

    # f32 output path: tight check of the conv/ReLU/BN math.
    out_f32 = conv1d_relu_bn(x, weight, gamma, beta, out_dtype=jnp.float32)
    jax.block_until_ready(out_f32)
    assert out_f32.shape == (B, Cout, T)
    err = float(jnp.max(jnp.abs(out_f32 - ref)))
    assert err < 1e-2, f"f32-out max abs error {err}"

    # default bf16 output path (the performance configuration).
    out_bf16 = conv1d_relu_bn(x, weight, gamma, beta)
    jax.block_until_ready(out_bf16)
    assert out_bf16.shape == (B, Cout, T)
    assert out_bf16.dtype == jnp.bfloat16
    err_bf = float(jnp.max(jnp.abs(out_bf16.astype(jnp.float32) - ref)))
    assert err_bf < 5e-2, f"bf16-out max abs error {err_bf}"

    print("KERNEL_OK")
</pallas_src>

<mosaic_0001>
module attributes {stable_mosaic.version = 11 : i64} {
  func.func @kernel(%arg0: i32, %arg1: i32, %arg2: memref<1x4x16xf32, #tpu.memory_space<vmem>>, %arg3: memref<8x4xbf16, #tpu.memory_space<vmem>>, %arg4: memref<1x1x8x2xf32, #tpu.memory_space<vmem>>) attributes {dimension_semantics = [#tpu.dimension_semantics<parallel>, #tpu.dimension_semantics<parallel>], iteration_bounds = array<i64: 2, 1>, scalar_prefetch = 0 : i64, scratch_operands = 0 : i64, tpu.core_type = #tpu.core_type<tc>, window_params = [{transform_indices = @transform_0, window_bounds = array<i64: 1, 4, 16>}, {pipeline_mode = #tpu.pipeline_mode<synchronous>, transform_indices = @transform_1, window_bounds = array<i64: 8, 4>}, {transform_indices = @transform_2, window_bounds = array<i64: 1, 1, 8, 2>}]} {
    %c0 = arith.constant 0 : index
    %c0_0 = arith.constant 0 : index
    %c0_1 = arith.constant 0 : index
    %0 = vector.load %arg2[%c0, %c0_0, %c0_1] : memref<1x4x16xf32, #tpu.memory_space<vmem>>, vector<1x4x16xf32>
    %1 = vector.shape_cast %0 : vector<1x4x16xf32> to vector<4x16xf32>
    %2 = arith.truncf %1 : vector<4x16xf32> to vector<4x16xbf16>
    %c0_2 = arith.constant 0 : index
    %c0_3 = arith.constant 0 : index
    %3 = vector.load %arg3[%c0_2, %c0_3] : memref<8x4xbf16, #tpu.memory_space<vmem>>, vector<8x4xbf16>
    %cst = arith.constant dense<0.000000e+00> : vector<8x16xf32>
    %4 = tpu.matmul %3, %2, %cst {dimension_numbers = #tpu.dot_dimension_numbers<[1], [0], [0], [1], [0, 0, 1, 1], [], []>} : vector<8x4xbf16>, vector<4x16xbf16>, vector<8x16xf32> -> vector<8x16xf32>
    %cst_4 = arith.constant 0.000000e+00 : f32
    %5 = vector.broadcast %cst_4 : f32 to vector<8x16xf32>
    %6 = arith.maximumf %4, %5 : vector<8x16xf32>
    %cst_5 = arith.constant dense<0.000000e+00> : vector<8xf32>
    %7 = vector.multi_reduction <add>, %6, %cst_5 [1] : vector<8x16xf32> to vector<8xf32>
    %8 = vector.shape_cast %7 : vector<8xf32> to vector<8x1xf32>
    %c0_6 = arith.constant 0 : index
    %c0_7 = arith.constant 0 : index
    %c0_8 = arith.constant 0 : index
    %c0_9 = arith.constant 0 : index
    %9 = vector.load %arg4[%c0_6, %c0_7, %c0_8, %c0_9] : memref<1x1x8x2xf32, #tpu.memory_space<vmem>>, vector<1x1x8x1xf32>
    %10 = vector.shape_cast %9 : vector<1x1x8x1xf32> to vector<8x1xf32>
    %11 = vector.shape_cast %8 : vector<8x1xf32> to vector<1x1x8x1xf32>
    tpu.vector_store %arg4[%c0_6, %c0_7, %c0_8, %c0_9], %11 {strides = array<i32>} : memref<1x1x8x2xf32, #tpu.memory_space<vmem>>, vector<1x1x8x1xf32>,
    %12 = arith.mulf %6, %6 : vector<8x16xf32>
    %cst_10 = arith.constant dense<0.000000e+00> : vector<8xf32>
    %13 = vector.multi_reduction <add>, %12, %cst_10 [1] : vector<8x16xf32> to vector<8xf32>
    %14 = vector.shape_cast %13 : vector<8xf32> to vector<8x1xf32>
    %c0_11 = arith.constant 0 : index
    %c0_12 = arith.constant 0 : index
    %c0_13 = arith.constant 0 : index
    %c1 = arith.constant 1 : index
    %15 = vector.load %arg4[%c0_11, %c0_12, %c0_13, %c1] : memref<1x1x8x2xf32, #tpu.memory_space<vmem>>, vector<1x1x8x1xf32>
    %16 = vector.shape_cast %15 : vector<1x1x8x1xf32> to vector<8x1xf32>
    %17 = vector.shape_cast %14 : vector<8x1xf32> to vector<1x1x8x1xf32>
    tpu.vector_store %arg4[%c0_11, %c0_12, %c0_13, %c1], %17 {strides = array<i32>} : memref<1x1x8x2xf32, #tpu.memory_space<vmem>>, vector<1x1x8x1xf32>,
    return
  }
  func.func @transform_0(%arg0: i32, %arg1: i32) -> (i32, i32, i32) {
    %c0_i32 = arith.constant 0 : i32
    %c0_i32_0 = arith.constant 0 : i32
    return %arg0, %c0_i32, %arg1 : i32, i32, i32
  }
  func.func @transform_1(%arg0: i32, %arg1: i32) -> (i32, i32) {
    %c0_i32 = arith.constant 0 : i32
    %c0_i32_0 = arith.constant 0 : i32
    %c0_i32_1 = arith.constant 0 : i32
    return %c0_i32, %c0_i32_0 : i32, i32
  }
  func.func @transform_2(%arg0: i32, %arg1: i32) -> (i32, i32, i32, i32) {
    %c0_i32 = arith.constant 0 : i32
    %c0_i32_0 = arith.constant 0 : i32
    %c0_i32_1 = arith.constant 0 : i32
    return %arg0, %arg1, %c0_i32, %c0_i32_0 : i32, i32, i32, i32
  }
}

</mosaic_0001>

<llo_original>
// kernel: tpu_custom_call.1
$region0: #{tpu_custom_call.1}
  #allocation0 [shape = 'u32[]', space=smem, size = 0x4, offset = 0x4, fixed_abs, tag = 'smem constant byte address 0x4 - core index']
  #allocation1 [shape = 'u32[144,128]{1,0:T(1,128)}', space=vmem, size = 0x12000, scoped, tag = 'internal scratch']
  %s0 = inlined_call_operand.hbm [shape: f32[2,4,16], index: 0, kind: input, shape index: {}]
  %s1 = inlined_call_operand.vmem [shape: bf16[8,4], index: 1, kind: input, shape index: {}]
  %s2 = inlined_call_operand.vmem [shape: f32[2,1,8,2], index: 2, kind: output, shape index: {}]
  %s3 = sld [smem:[#allocation0]]
  $region45: #{tpu_custom_call.1} parent=0
    _
  %s5 = ssub.s32 1, %s3
  %s6 = scalar_select 0, %s5, %s3
  $region1: #{tpu_custom_call.1} parent=0
    #allocation2 [shape = 'u8[4096]{0}', space=vmem, size = 0x1000, scoped, tag = 'input window, operand 0']
    #allocation3 [shape = 's32[2]{0}', space=sflag, size = 0x8, scoped, tag = 'scoped memory for tpu_custom_call.1']
    %7 = vsyncpa [#allocation3], 0
    %s8 = scalar_lea.sflag [#allocation3], 1
    %9 = vsyncpa %s8, 0
    loop: start=0, step=1, limit=4
    $region2: #{tpu_custom_call.1} parent=1 // loop_pre_header
      _
    $region3: #{tpu_custom_call.1} parent=1 // loop_header
      %s11 = sphi 0, %s15
      %p12 = scmp.ge.s32.totalorder %s11, 4
      %s18 = sphi 0, %s30
      %s19 = sphi 0, %s26
      %s20 = sphi 0, %s18
      %s21 = sphi 0, %s19
      %s22 = sphi 0, %s20
      %s23 = sphi 0, %s21
      %s35 = sphi 0, %s37
      %s38 = sphi 0, %s35
      %s39 = sphi 0, %s38
      %s55 = sphi 0, %s39
      %s59 = sphi 0, %s59
      %s61 = sphi 0, %s59
      %s62 = sphi 0, %s61
      %s76 = sphi 0, %s62
      %s84 = sphi 0, %s86
      %s87 = sphi 0, %s84
      %s88 = sphi 0, %s87
      %s104 = sphi 0, %s88
    $region4: #{tpu_custom_call.1} parent=1 // loop_header_branch
      %14 = sbr.rel (%p12) target = $region8
    $region5: #{tpu_custom_call.1} parent=1 // loop_body
      %s16 = ssub.s32 %s11, 1
      %s17 = ssub.s32 %s11, 2
      %s24 = sadd.s32 1, %s19
      %p25 = scmp.ge.s32.totalorder %s24, 1
      %s26 = scalar_select %p25, 0, %s24
      %s27 = sadd.s32 1, %s18
      %s28 = scalar_select %p25, %s27, %s18
      %p29 = scmp.ge.s32.totalorder %s28, 2
      %s30 = scalar_select %p29, 0, %s28
      %s31 = ssub.s32 %s18, %s30
      %s32 = ssub.s32 %s19, %s26
      %s33 = sor.u32 %s31, %s32
      %p34 = scmp.eq.s32.totalorder %s33, 0
      %s36 = sadd.s32 %s35, 1
      %s37 = scalar_select %p34, %s35, %s36
      %p40 = pneg %p34
      %p41 = scmp.eq.s32.totalorder %s11, 1
      %p42 = por %p40, %p41
      %p43 = scmp.ne.s32.totalorder %s35, %s38
      %p44 = scmp.eq.s32.totalorder %s11, 0
      %p45 = por %p43, %p44
      %p46 = scmp.ne.s32.totalorder %s35, %s38
      %p47 = scmp.eq.s32.totalorder %s16, 1
      %p48 = por %p46, %p47
      %p49 = scmp.ne.s32.totalorder %s38, %s39
      %p50 = scmp.eq.s32.totalorder %s16, 0
      %p51 = por %p49, %p50
      %p52 = scmp.ne.s32.totalorder %s38, %s39
      %p53 = scmp.eq.s32.totalorder %s17, 1
      %p54 = por %p52, %p53
      %p56 = scmp.ne.s32.totalorder %s39, %s55
      %p57 = scmp.eq.s32.totalorder %s17, 0
      %p58 = por %p56, %p57
      %s60 = sadd.s32 %s59, 1
      %p63 = scmp.eq.s32.totalorder %s11, 1
      %p64 = scmp.ne.s32.totalorder %s59, %s61
      %p65 = scmp.eq.s32.totalorder %s11, 0
      %p66 = por %p64, %p65
      %p67 = scmp.ne.s32.totalorder %s59, %s61
      %p68 = scmp.eq.s32.totalorder %s16, 1
      %p69 = por %p67, %p68
      %p70 = scmp.ne.s32.totalorder %s61, %s62
      %p71 = scmp.eq.s32.totalorder %s16, 0
      %p72 = por %p70, %p71
      %p73 = scmp.ne.s32.totalorder %s61, %s62
      %p74 = scmp.eq.s32.totalorder %s17, 1
      %p75 = por %p73, %p74
      %p77 = scmp.ne.s32.totalorder %s62, %s76
      %p78 = scmp.eq.s32.totalorder %s17, 0
      %p79 = por %p77, %p78
      %s80 = ssub.s32 %s18, %s30
      %s81 = ssub.s32 %s19, %s26
      %s82 = sor.u32 %s80, %s81
      %p83 = scmp.eq.s32.totalorder %s82, 0
      %s85 = sadd.s32 %s84, 1
      %s86 = scalar_select %p83, %s84, %s85
      %p89 = pneg %p83
      %p90 = scmp.eq.s32.totalorder %s11, 1
      %p91 = por %p89, %p90
      %p92 = scmp.ne.s32.totalorder %s84, %s87
      %p93 = scmp.eq.s32.totalorder %s11, 0
      %p94 = por %p92, %p93
      %p95 = scmp.ne.s32.totalorder %s84, %s87
      %p96 = scmp.eq.s32.totalorder %s16, 1
      %p97 = por %p95, %p96
      %p98 = scmp.ne.s32.totalorder %s87, %s88
      %p99 = scmp.eq.s32.totalorder %s16, 0
      %p100 = por %p98, %p99
      %p101 = scmp.ne.s32.totalorder %s87, %s88
      %p102 = scmp.eq.s32.totalorder %s17, 1
      %p103 = por %p101, %p102
      %p105 = scmp.ne.s32.totalorder %s88, %s104
      %p106 = scmp.eq.s32.totalorder %s17, 0
      %p107 = por %p105, %p106
      %p108 = scmp.le.s32.totalorder 1, %s11
      %p109 = scmp.lt.s32.totalorder %s11, 3
      %p110 = pnand %p108, %p109
      %p111 = pneg %p110
      // Predicated region
      $region9: #{tpu_custom_call.1} parent=5 // pred_check
        _
      $region10: #{tpu_custom_call.1} parent=5 // pred_check_branch
        %113 = sbr.rel (%p110) target = $region12
      $region11: #{tpu_custom_call.1} parent=5 // pred_region
        %s114 = ssub.s32 %s11, 1
        // Predicated region
        $region13: #{tpu_custom_call.1} parent=11 // pred_check
          %p115 = pneg %p72
        $region14: #{tpu_custom_call.1} parent=11 // pred_check_branch
          %117 = sbr.rel (%p115) target = $region16
        $region15: #{tpu_custom_call.1} parent=11 // pred_region
          _
        $region16: #{tpu_custom_call.1} parent=11 // pred_fallthru
          _
      $region12: #{tpu_custom_call.1} parent=5 // pred_fallthru
        _
      %p118 = scmp.lt.s32.totalorder %s11, 2
      // Predicated region
      $region17: #{tpu_custom_call.1} parent=5 // pred_check
        %p119 = pneg %p118
      $region18: #{tpu_custom_call.1} parent=5 // pred_check_branch
        %121 = sbr.rel (%p119) target = $region20
      $region19: #{tpu_custom_call.1} parent=5 // pred_region
        // Predicated region
        $region21: #{tpu_custom_call.1} parent=19 // pred_check
          %p122 = pneg %p45
        $region22: #{tpu_custom_call.1} parent=19 // pred_check_branch
          %124 = sbr.rel (%p122) target = $region24
        $region23: #{tpu_custom_call.1} parent=19 // pred_region
          %s125 = sand.u32 %s35, 1
          %s126 = scalar_lea.sflag [#allocation3], %s125
          %s127 = sand.u32 %s35, 1
          %s128 = smul.addr %s127, 4
          %s129 = scalar_lea.vmem [#allocation2], %s128
          %s131 = ssub.s32 64, 64
          %132 = vsyncadd %s126, %s131
          %s133 = sadd.s32 %s19, %s18
          %s134 = smul.addr %s133, 64
          %s135 = scalar_lea.hbm %s0, %s134
          %s137 = sshll.u32 %s129, 4
          %s138 = int_to_ptr.vmem [resolvable:$true] %s137
          %140 = dma.hbm_to_vmem [thread:$0]  %s135, 64, %s138, %s126
        $region24: #{tpu_custom_call.1} parent=19 // pred_fallthru
          _
      $region20: #{tpu_custom_call.1} parent=5 // pred_fallthru
        _
      %p141 = scmp.le.s32.totalorder 1, %s11
      %p142 = scmp.lt.s32.totalorder %s11, 3
      %p143 = pnand %p141, %p142
      %p144 = pneg %p143
      // Predicated region
      $region25: #{tpu_custom_call.1} parent=5 // pred_check
        _
      $region26: #{tpu_custom_call.1} parent=5 // pred_check_branch
        %146 = sbr.rel (%p143) target = $region28
      $region27: #{tpu_custom_call.1} parent=5 // pred_region
        %s147 = ssub.s32 %s11, 1
        %s148 = sand.u32 %s38, 1
        %s149 = scalar_lea.sflag [#allocation3], %s148
        %s150 = sand.u32 %s38, 1
        %s151 = smul.addr %s150, 4
        %s152 = scalar_lea.vmem [#allocation2], %s151
        // Predicated region
        $region29: #{tpu_custom_call.1} parent=27 // pred_check
          %p153 = pneg %p51
        $region30: #{tpu_custom_call.1} parent=27 // pred_check_branch
          %155 = sbr.rel (%p153) target = $region32
        $region31: #{tpu_custom_call.1} parent=27 // pred_region
          %156 = dma.done %s149, 64
        $region32: #{tpu_custom_call.1} parent=27 // pred_fallthru
          _
        %s157 = sand.u32 %s38, 1
        %s158 = scalar_lea.sflag [#allocation3], %s157
        %s159 = sand.u32 %s38, 1
        %s160 = smul.addr %s159, 4
        %s161 = scalar_lea.vmem [#allocation2], %s160
        %p162 = pneg %p51
        %p163 = pneg %p48
        %p164 = pneg %p72
        %p165 = pneg %p69
        %p166 = pneg %p100
        %p167 = pneg %p97
        %p168 = scmp.lt.s32.totalorder %s20, 1
        %s169 = scalar_select %p168, %s20, 1
        %p170 = scmp.lt.s32.totalorder %s21, 0
        %s171 = scalar_select %p170, %s21, 0
        %s172 = sadd.s32 %s171, %s169
        %s173 = smul.addr %s172, 8
        %s174 = scalar_lea.vmem %s2, %s173
        %p175 = scmp.lt.s32.totalorder %s20, 1
        %s176 = scalar_select %p175, %s20, 1
        %p177 = scmp.lt.s32.totalorder %s21, 0
        %s178 = scalar_select %p177, %s21, 0
        %s179 = sadd.s32 %s178, %s176
        %s180 = smul.addr %s179, 8
        %s181 = scalar_lea.vmem %s2, %s180
        %v183 = vld [vmem:[%s152] sm:$0xf]
        %v184 = vpack.c.bf16 %v183, %v183
        %v185 = vld [vmem:[%s1] sm:$0xf]
        %vm186 = vcmask 31744
        %v188 = vsel %vm186, %v185, 0
        %vm190 = vcmask 1041408
        %v192 = vsel %vm190, %v184, 0
        %194 = vmatprep.subr.bf16.mxu0 0
        %195 = vmatpush1.bf16.msra.mxu0 %v192
        %196 = vmatprep.subr.bf16.mxu0 0
        %197 = vmatpush1.bf16.msra.mxu0 0
        %198 = vmatprep.subr.bf16.mxu0 0
        %199 = vmatpush1.bf16.msra.mxu0 0
        %200 = vmatprep.subr.bf16.mxu0 0
        %201 = vmatpush1.bf16.msra.mxu0 0
        %202 = vmatprep.subr.bf16.mxu0 0
        %203 = vmatpush1.bf16.msra.mxu0 0
        %204 = vmatprep.subr.bf16.mxu0 0
        %205 = vmatpush1.bf16.msra.mxu0 0
        %206 = vmatprep.subr.bf16.mxu0 0
        %207 = vmatpush1.bf16.msra.mxu0 0
        %208 = vmatprep.subr.bf16.mxu0 0
        %209 = vmatpush1.bf16.msra.mxu0 0
        %210 = vmatprep.subr.bf16.mxu0 0
        %211 = vmatpush1.bf16.msra.mxu0 0
        %212 = vmatprep.subr.bf16.mxu0 0
        %213 = vmatpush1.bf16.msra.mxu0 0
        %214 = vmatprep.subr.bf16.mxu0 0
        %215 = vmatpush1.bf16.msra.mxu0 0
        %216 = vmatprep.subr.bf16.mxu0 0
        %217 = vmatpush1.bf16.msra.mxu0 0
        %218 = vmatprep.subr.bf16.mxu0 0
        %219 = vmatpush1.bf16.msra.mxu0 0
        %220 = vmatprep.subr.bf16.mxu0 0
        %221 = vmatpush1.bf16.msra.mxu0 0
        %222 = vmatprep.subr.bf16.mxu0 0
        %223 = vmatpush1.bf16.msra.mxu0 0
        %224 = vmatprep.subr.bf16.mxu0 0
        %225 = vmatpush1.bf16.msra.mxu0 0
        %226 = vmatprep.mubr.bf16.mxu0 0
        %227 = vmatmul.mubr.bf16.gmra.mrb[0].mxu0 %v188
        %v228 = vpop.f32.mrb[0].mxu0
        %v229 = vadd.f32 0.0, %v228
        %v230 = vpop.f32.mrb[0].mxu0
        %v231 = vpop.f32.mrb[0].mxu0
        %v232 = vpop.f32.mrb[0].mxu0
        %233 = vdwg.mxu0
        %v234 = vmax.f32 %v229, 0.0
        %vm235 = vcmask 130048
        %v236 = vsel %vm235, %v234, 0.0
        %237 = vadd.xlane.f32.xlu0 %v236
        %v238 = vpop.xlane.xlu0 %237
        %vm239 = vcmask 7168
        %240 = vst.msk [vmem:[%s181] sm:$0xff] %vm239, %v238
        %v241 = vmul.f32 %v234, %v234
        %v242 = vsel %vm235, %v241, 0.0
        %243 = vadd.xlane.f32.xlu0 %v242
        %v244 = vpop.xlane.xlu0 %243
        %vm245 = vcmask 15368
        %246 = vst.msk [vmem:[%s181] sm:$0xff] %vm245, %v244
        %p247 = scmp.lt.s32.totalorder %s20, 1
        %s248 = scalar_select %p247, %s20, 1
        %p249 = scmp.lt.s32.totalorder %s21, 0
        %s250 = scalar_select %p249, %s21, 0
        %s251 = sadd.s32 %s250, %s248
        %s252 = smul.addr %s251, 8
        %s253 = scalar_lea.vmem %s2, %s252
        // Predicated region
        $region33: #{tpu_custom_call.1} parent=27 // pred_check
          %p254 = pneg %p97
        $region34: #{tpu_custom_call.1} parent=27 // pred_check_branch
          %256 = sbr.rel (%p254) target = $region36
        $region35: #{tpu_custom_call.1} parent=27 // pred_region
          _
        $region36: #{tpu_custom_call.1} parent=27 // pred_fallthru
          _
      $region28: #{tpu_custom_call.1} parent=5 // pred_fallthru
        _
      %p257 = scmp.le.s32.totalorder 2, %s11
      // Predicated region
      $region37: #{tpu_custom_call.1} parent=5 // pred_check
        %p258 = pneg %p257
      $region38: #{tpu_custom_call.1} parent=5 // pred_check_branch
        %260 = sbr.rel (%p258) target = $region40
      $region39: #{tpu_custom_call.1} parent=5 // pred_region
        %s261 = ssub.s32 %s11, 2
        // Predicated region
        $region41: #{tpu_custom_call.1} parent=39 // pred_check
          %p262 = pneg %p103
        $region42: #{tpu_custom_call.1} parent=39 // pred_check_branch
          %264 = sbr.rel (%p262) target = $region44
        $region43: #{tpu_custom_call.1} parent=39 // pred_region
          %p265 = scmp.lt.s32.totalorder %s22, 1
          %s266 = scalar_select %p265, %s22, 1
          %p267 = scmp.lt.s32.totalorder %s23, 0
          %s268 = scalar_select %p267, %s23, 0
          %s269 = sadd.s32 %s268, %s266
          %s270 = smul.addr %s269, 8
          %s271 = scalar_lea.vmem %s2, %s270
        $region44: #{tpu_custom_call.1} parent=39 // pred_fallthru
          _
      $region40: #{tpu_custom_call.1} parent=5 // pred_fallthru
        _
    $region6: #{tpu_custom_call.1} parent=1 // loop_footer
      %s15 = sadd.s32 1, %s11
    $region7: #{tpu_custom_call.1} parent=1 // loop_footer_branch
      %10 = sbr.rel target = $region3
    $region8: #{tpu_custom_call.1} parent=1 // loop_exit
      _
    %272 = vsyncpa [#allocation3], 1
    %s273 = scalar_lea.sflag [#allocation3], 1
    %274 = vsyncpa %s273, 1

</llo_original>
